<compile_context>
chip_gen: v5e
topology: v5e:2x2
jax: 0.10.0
libtpu: 0.0.40
codegen_flags: <defaults>
</compile_context>

<pallas_src>
import jax
import jax.numpy as jnp
import numpy as np
from jax.experimental import pallas as pl
from jax.experimental.pallas import tpu as pltpu


def _round_up(n, m):
    return ((n + m - 1) // m) * m


def _vmem_limit_bytes():
    """Scoped-VMEM budget per generation: 32 MiB on v7x (64 MiB physical),
    64 MiB on v5e / v6e (128 MiB physical)."""
    cap = None
    try:
        cap = getattr(pltpu.get_tpu_info(), "vmem_capacity_bytes", None)
    except Exception:
        cap = None
    if not cap:
        cap = 64 * 1024 * 1024            # conservative fallback: assume v7x (smallest VMEM)
    return int(min(cap // 2, 64 * 1024 * 1024))


# ------------------------------ Pallas kernel ------------------------------- #

def _att_kernel(rep_ref, x_ref, w1_ref, w2_ref, o_ref):
    """Fused AttLayer forward on one (tm, Cp) row tile.

    rep: (tm, Cp)   x: (tm, Cp)   w1: (Cp, H)   w2: (1, H)   out: (tm, Cp)
    """
    # Linear(C -> H, bias=False) on the MXU in the input dtype, f32 accumulate, + ReLU.
    h = jnp.maximum(
        jnp.dot(rep_ref[...], w1_ref[...], preferred_element_type=jnp.float32),
        0.0)                                                     # (tm, H) f32

    # Linear(H -> 1, bias=False): H is tiny -> VPU multiply + XLU lane reduction
    # (both free slots while the kernel is DMA-bound); no N=1 MXU matmul.
    s = jnp.sum(h * w2_ref[...].astype(jnp.float32),
                axis=-1, keepdims=True)                          # (tm, 1) f32

    # Hardsigmoid: clamp(s / 6 + 0.5, 0, 1)   (== torch relu6(s + 3) / 6)
    y = jnp.clip(s * (1.0 / 6.0) + 0.5, 0.0, 1.0)

    # Gate x rows by y; keep x in its native dtype (bf16 stays bf16 on v6e/v7x).
    o_ref[...] = x_ref[...] * y.astype(o_ref.dtype)


# ------------------------------ kernel wrapper ------------------------------ #

def att_layer_forward(representation, x, w1, w2):
    """AttLayer forward.

    representation: (B, C)
    x:              (B, C)
    w1: torch fc[0].weight, shape (H, C) with H = C // reduction
    w2: torch fc[2].weight, shape (1, H)
    returns (B, C)
    """
    B, C = x.shape
    H = w1.shape[0]
    itemsize = jnp.dtype(x.dtype).itemsize
    w_itemsize = jnp.dtype(w1.dtype).itemsize

    # ---- lane-dense channel axis: pad C to a multiple of 128 (no-op when aligned) ----
    Cp = _round_up(C, 128)
    w1_t = jnp.transpose(w1)                          # (C, H) matmul layout
    if Cp != C:
        representation = jnp.pad(representation, ((0, 0), (0, Cp - C)))
        x = jnp.pad(x, ((0, 0), (0, Cp - C)))
        w1_t = jnp.pad(w1_t, ((0, Cp - C), (0, 0)))   # zero rows -> matmul unchanged
    w2_r = w2.reshape(1, H)

    # ---- row-tile sizing against the per-generation scoped-VMEM budget ----
    vmem_limit = _vmem_limit_bytes()                  # 32 MiB (v7x) / 64 MiB (v5e, v6e)
    weight_bytes = 2 * (Cp * H + H) * w_itemsize      # double-buffered, VMEM-resident weights
    budget = (3 * vmem_limit) // 4 - weight_bytes     # ~24 MiB (v7x) / ~48 MiB working set
    tm = budget // (6 * Cp * itemsize)                # rep + x + out tiles, 2 buffers each
    tm = max(8, min(tm, 2048))
    # keep roughly >= 4 grid steps so both v7x TensorCores get >= 2 pipelined iterations
    tm = min(tm, max(8, _round_up(pl.cdiv(B, 4), 8)))
    if tm >= B:
        tm = B                      # single full-extent row block (always a legal block shape)
    else:
        tm = (tm // 8) * 8          # (8, 128)-aligned tile; ragged last block is masked
    grid = (pl.cdiv(B, tm),)

    out = pl.pallas_call(
        _att_kernel,
        out_shape=jax.ShapeDtypeStruct((B, Cp), x.dtype),
        grid_spec=pltpu.PrefetchScalarGridSpec(
            num_scalar_prefetch=0,
            grid=grid,
            in_specs=[
                pl.BlockSpec((tm, Cp), lambda i: (i, 0)),   # representation tile
                pl.BlockSpec((tm, Cp), lambda i: (i, 0)),   # x tile
                pl.BlockSpec((Cp, H), lambda i: (0, 0)),    # w1, VMEM-resident
                pl.BlockSpec((1, H), lambda i: (0, 0)),     # w2, VMEM-resident
            ],
            out_specs=pl.BlockSpec((tm, Cp), lambda i: (i, 0)),
        ),
        compiler_params=pltpu.CompilerParams(
            dimension_semantics=("parallel",),              # shard row blocks across TCs
            vmem_limit_bytes=vmem_limit,
        ),
        cost_estimate=pl.CostEstimate(
            flops=2 * B * Cp * H + 3 * B * H + 5 * B + B * Cp,
            transcendentals=0,
            bytes_accessed=itemsize * (3 * B * Cp) + w_itemsize * (Cp * H + H),
        ),
    )(representation, x, w1_t, w2_r)

    return out[:, :C] if Cp != C else out


# ---------------------------- pure-JAX reference ---------------------------- #

def reference_forward(representation, x, w1, w2):
    h = jnp.maximum(representation @ w1.T, 0.0)           # (B, H)
    s = h @ w2.T                                           # (B, 1)
    y = jnp.clip(s / 6.0 + 0.5, 0.0, 1.0)                  # hardsigmoid
    return x * y


# ----------------------------------- main ----------------------------------- #

if __name__ == "__main__":
    key = jax.random.PRNGKey(0)
    k_rep, k_x, k_w1, k_w2 = jax.random.split(key, 4)

    B, C, reduction = 2, 64, 16
    H = C // reduction                                     # 4

    representation = jax.random.normal(k_rep, (B, C), jnp.float32)
    x = jax.random.normal(k_x, (B, C), jnp.float32)
    # torch nn.Linear weight layouts: (out_features, in_features)
    w1 = 0.1 * jax.random.normal(k_w1, (H, C), jnp.float32)
    w2 = 0.1 * jax.random.normal(k_w2, (1, H), jnp.float32)

    out = jax.block_until_ready(att_layer_forward(representation, x, w1, w2))
    ref = reference_forward(representation, x, w1, w2)

    assert out.shape == (B, C)
    np.testing.assert_allclose(np.asarray(out), np.asarray(ref),
                               rtol=1e-2, atol=1e-2)
    print("KERNEL_OK")
</pallas_src>

<mosaic_0001>
module attributes {stable_mosaic.version = 11 : i64} {
  func.func @_att_kernel(%arg0: i32, %arg1: memref<2x128xf32, #tpu.memory_space<vmem>>, %arg2: memref<2x128xf32, #tpu.memory_space<vmem>>, %arg3: memref<128x4xf32, #tpu.memory_space<vmem>>, %arg4: memref<1x4xf32, #tpu.memory_space<vmem>>, %arg5: memref<2x128xf32, #tpu.memory_space<vmem>>) attributes {dimension_semantics = [#tpu.dimension_semantics<parallel>], iteration_bounds = array<i64: 1>, scalar_prefetch = 0 : i64, scratch_operands = 0 : i64, tpu.core_type = #tpu.core_type<tc>, window_params = [{transform_indices = @transform_0, window_bounds = array<i64: 2, 128>}, {transform_indices = @transform_1, window_bounds = array<i64: 2, 128>}, {pipeline_mode = #tpu.pipeline_mode<synchronous>, transform_indices = @transform_2, window_bounds = array<i64: 128, 4>}, {pipeline_mode = #tpu.pipeline_mode<synchronous>, transform_indices = @transform_3, window_bounds = array<i64: 1, 4>}, {transform_indices = @transform_4, window_bounds = array<i64: 2, 128>}]} {
    %c0 = arith.constant 0 : index
    %c0_0 = arith.constant 0 : index
    %0 = vector.load %arg1[%c0, %c0_0] : memref<2x128xf32, #tpu.memory_space<vmem>>, vector<2x128xf32>
    %c0_1 = arith.constant 0 : index
    %c0_2 = arith.constant 0 : index
    %1 = vector.load %arg3[%c0_1, %c0_2] : memref<128x4xf32, #tpu.memory_space<vmem>>, vector<128x4xf32>
    %cst = arith.constant dense<0.000000e+00> : vector<2x4xf32>
    %2 = tpu.matmul %0, %1, %cst {dimension_numbers = #tpu.dot_dimension_numbers<[1], [0], [0], [1], [0, 0, 1, 1], [], []>} : vector<2x128xf32>, vector<128x4xf32>, vector<2x4xf32> -> vector<2x4xf32>
    %cst_3 = arith.constant 0.000000e+00 : f32
    %3 = vector.broadcast %cst_3 : f32 to vector<2x4xf32>
    %4 = arith.maximumf %2, %3 : vector<2x4xf32>
    %c0_4 = arith.constant 0 : index
    %c0_5 = arith.constant 0 : index
    %5 = vector.load %arg4[%c0_4, %c0_5] : memref<1x4xf32, #tpu.memory_space<vmem>>, vector<1x4xf32>
    %6 = vector.broadcast %5 : vector<1x4xf32> to vector<2x4xf32>
    %7 = arith.mulf %4, %6 : vector<2x4xf32>
    %cst_6 = arith.constant dense<0.000000e+00> : vector<2xf32>
    %8 = vector.multi_reduction <add>, %7, %cst_6 [1] : vector<2x4xf32> to vector<2xf32>
    %9 = vector.shape_cast %8 : vector<2xf32> to vector<2x1xf32>
    %cst_7 = arith.constant 0.166666672 : f32
    %10 = vector.broadcast %cst_7 : f32 to vector<2x1xf32>
    %11 = arith.mulf %9, %10 : vector<2x1xf32>
    %cst_8 = arith.constant 5.000000e-01 : f32
    %12 = vector.broadcast %cst_8 : f32 to vector<2x1xf32>
    %13 = arith.addf %11, %12 : vector<2x1xf32>
    %cst_9 = arith.constant 0.000000e+00 : f32
    %cst_10 = arith.constant 1.000000e+00 : f32
    %14 = vector.broadcast %cst_9 : f32 to vector<2x1xf32>
    %15 = arith.maximumf %14, %13 : vector<2x1xf32>
    %16 = vector.broadcast %cst_10 : f32 to vector<2x1xf32>
    %17 = arith.minimumf %16, %15 : vector<2x1xf32>
    %c0_11 = arith.constant 0 : index
    %c0_12 = arith.constant 0 : index
    %18 = vector.load %arg2[%c0_11, %c0_12] : memref<2x128xf32, #tpu.memory_space<vmem>>, vector<2x128xf32>
    %19 = vector.broadcast %17 : vector<2x1xf32> to vector<2x128xf32>
    %20 = arith.mulf %18, %19 : vector<2x128xf32>
    %c0_13 = arith.constant 0 : index
    %c0_14 = arith.constant 0 : index
    %21 = vector.load %arg5[%c0_13, %c0_14] : memref<2x128xf32, #tpu.memory_space<vmem>>, vector<2x128xf32>
    tpu.vector_store %arg5[%c0_13, %c0_14], %20 {strides = array<i32>} : memref<2x128xf32, #tpu.memory_space<vmem>>, vector<2x128xf32>,
    return
  }
  func.func @transform_0(%arg0: i32) -> (i32, i32) {
    %c0_i32 = arith.constant 0 : i32
    %c0_i32_0 = arith.constant 0 : i32
    return %arg0, %c0_i32 : i32, i32
  }
  func.func @transform_1(%arg0: i32) -> (i32, i32) {
    %c0_i32 = arith.constant 0 : i32
    %c0_i32_0 = arith.constant 0 : i32
    return %arg0, %c0_i32 : i32, i32
  }
  func.func @transform_2(%arg0: i32) -> (i32, i32) {
    %c0_i32 = arith.constant 0 : i32
    %c0_i32_0 = arith.constant 0 : i32
    %c0_i32_1 = arith.constant 0 : i32
    return %c0_i32, %c0_i32_0 : i32, i32
  }
  func.func @transform_3(%arg0: i32) -> (i32, i32) {
    %c0_i32 = arith.constant 0 : i32
    %c0_i32_0 = arith.constant 0 : i32
    %c0_i32_1 = arith.constant 0 : i32
    return %c0_i32, %c0_i32_0 : i32, i32
  }
  func.func @transform_4(%arg0: i32) -> (i32, i32) {
    %c0_i32 = arith.constant 0 : i32
    %c0_i32_0 = arith.constant 0 : i32
    return %arg0, %c0_i32 : i32, i32
  }
}

</mosaic_0001>

<llo_original>
// kernel: tpu_custom_call.1
$region0: #{tpu_custom_call.1}
  #allocation0 [shape = 'u32[]', space=smem, size = 0x4, offset = 0x4, fixed_abs, tag = 'smem constant byte address 0x4 - core index']
  #allocation1 [shape = 'u32[72,128]{1,0:T(1,128)}', space=vmem, size = 0x9000, scoped, tag = 'internal scratch']
  %s0 = inlined_call_operand.vmem [shape: f32[2,128], index: 0, kind: input, shape index: {}]
  %s1 = inlined_call_operand.vmem [shape: f32[2,128], index: 1, kind: input, shape index: {}]
  %s2 = inlined_call_operand.vmem [shape: f32[128,4], index: 2, kind: input, shape index: {}]
  %s3 = inlined_call_operand.vmem [shape: f32[1,4], index: 3, kind: input, shape index: {}]
  %s4 = inlined_call_operand.hbm [shape: f32[2,128], index: 4, kind: output, shape index: {}]
  %s5 = sld [smem:[#allocation0]]
  $region26: #{tpu_custom_call.1} parent=0
    _
  %s7 = ssub.s32 1, %s5
  %s8 = scalar_select 0, %s7, %s5
  $region1: #{tpu_custom_call.1} parent=0
    #allocation2 [shape = 'u8[1024]{0}', space=vmem, size = 0x400, scoped, tag = 'output window, operand 0, single buffered']
    #allocation3 [shape = 's32[1]{0}', space=sflag, size = 0x4, scoped, tag = 'scoped memory for tpu_custom_call.1']
    %9 = vsyncpa [#allocation3], 0
    // Predicated region
    $region2: #{tpu_custom_call.1} parent=1 // pred_check
      _
    $region3: #{tpu_custom_call.1} parent=1 // pred_check_branch
      %11 = sbr.rel (0) target = $region5
    $region4: #{tpu_custom_call.1} parent=1 // pred_region
      _
    $region5: #{tpu_custom_call.1} parent=1 // pred_fallthru
      _
    // Predicated region
    $region6: #{tpu_custom_call.1} parent=1 // pred_check
      _
    $region7: #{tpu_custom_call.1} parent=1 // pred_check_branch
      %13 = sbr.rel (0) target = $region9
    $region8: #{tpu_custom_call.1} parent=1 // pred_region
      _
    $region9: #{tpu_custom_call.1} parent=1 // pred_fallthru
      _
    // Predicated region
    $region10: #{tpu_custom_call.1} parent=1 // pred_check
      _
    $region11: #{tpu_custom_call.1} parent=1 // pred_check_branch
      %15 = sbr.rel (0) target = $region13
    $region12: #{tpu_custom_call.1} parent=1 // pred_region
      _
    $region13: #{tpu_custom_call.1} parent=1 // pred_fallthru
      _
    // Predicated region
    $region14: #{tpu_custom_call.1} parent=1 // pred_check
      _
    $region15: #{tpu_custom_call.1} parent=1 // pred_check_branch
      %17 = sbr.rel (0) target = $region17
    $region16: #{tpu_custom_call.1} parent=1 // pred_region
      _
    $region17: #{tpu_custom_call.1} parent=1 // pred_fallthru
      _
    %v18 = vld [vmem:[%s0] sm:$0x3]
    %v19 = vld [vmem:[%s2] sm:$0xff]
    %v20 = vld [vmem:[%s2 + $0x8] sm:$0xff]
    %v21 = vld [vmem:[%s2 + $0x10] sm:$0xff]
    %v22 = vld [vmem:[%s2 + $0x18] sm:$0xff]
    %v23 = vld [vmem:[%s2 + $0x20] sm:$0xff]
    %v24 = vld [vmem:[%s2 + $0x28] sm:$0xff]
    %v25 = vld [vmem:[%s2 + $0x30] sm:$0xff]
    %v26 = vld [vmem:[%s2 + $0x38] sm:$0xff]
    %v27 = vld [vmem:[%s2 + $0x40] sm:$0xff]
    %v28 = vld [vmem:[%s2 + $0x48] sm:$0xff]
    %v29 = vld [vmem:[%s2 + $0x50] sm:$0xff]
    %v30 = vld [vmem:[%s2 + $0x58] sm:$0xff]
    %v31 = vld [vmem:[%s2 + $0x60] sm:$0xff]
    %v32 = vld [vmem:[%s2 + $0x68] sm:$0xff]
    %v33 = vld [vmem:[%s2 + $0x70] sm:$0xff]
    %v34 = vld [vmem:[%s2 + $0x78] sm:$0xff]
    %35 = vmatpush.msra.mxu0 %v34
    %36 = vmatpush.msra.mxu0 %v33
    %37 = vmatpush.msra.mxu0 %v32
    %38 = vmatpush.msra.mxu0 %v31
    %39 = vmatpush.msra.mxu0 %v30
    %40 = vmatpush.msra.mxu0 %v29
    %41 = vmatpush.msra.mxu0 %v28
    %42 = vmatpush.msra.mxu0 %v27
    %43 = vmatpush.msra.mxu0 %v26
    %44 = vmatpush.msra.mxu0 %v25
    %45 = vmatpush.msra.mxu0 %v24
    %46 = vmatpush.msra.mxu0 %v23
    %47 = vmatpush.msra.mxu0 %v22
    %48 = vmatpush.msra.mxu0 %v21
    %49 = vmatpush.msra.mxu0 %v20
    %50 = vmatpush.msra.mxu0 %v19
    %51 = vmatmul.f32.gmra.mxu0 %v18
    %v52 = vpop.f32.mrf.mxu0
    %v53 = vadd.f32 0.0, %v52
    %54 = vdwg.mxu0
    %v55 = vmax.f32 %v53, 0.0
    %v56 = vld [vmem:[%s3] sm:$0x1]
    %v58 = vperm.slane %v56, 0
    %v60 = vmul.f32 %v55, %v58
    %vm61 = vcmask 25600
    %v62 = vsel %vm61, %v60, 0.0
    %63 = vadd.xlane.f32.xlu0 %v62
    %v64 = vpop.xlane.xlu0 %63
    %v65 = vmul.f32 %v64, 0.16666667
    %v66 = vadd.f32 %v65, 0.5
    %v67 = vmax.f32 %v66, 0.0
    %v68 = vmin.f32 %v67, 1.0
    %v69 = vld [vmem:[%s1] sm:$0x3]
    %v70 = vmul.f32 %v69, %v68
    %71 = vst [vmem:[#allocation2] sm:$0x3] %v70
    // Predicated region
    $region18: #{tpu_custom_call.1} parent=1 // pred_check
      _
    $region19: #{tpu_custom_call.1} parent=1 // pred_check_branch
      %73 = sbr.rel (0) target = $region21
    $region20: #{tpu_custom_call.1} parent=1 // pred_region
      %75 = vsyncadd [#allocation3], 0
      %s77 = sshll.u32 [#allocation2], 4
      %s78 = int_to_ptr.vmem [resolvable:$true] %s77
      %s79 = sshll.u32 %s4, 4
      %s80 = int_to_ptr.hbm [resolvable:$true] %s79
      %82 = dma.vmem_to_hbm [thread:$0]  %s78, 32, %s80, [#allocation3]
    $region21: #{tpu_custom_call.1} parent=1 // pred_fallthru
      _
    // Predicated region
    $region22: #{tpu_custom_call.1} parent=1 // pred_check
      _
    $region23: #{tpu_custom_call.1} parent=1 // pred_check_branch
      %84 = sbr.rel (0) target = $region25
    $region24: #{tpu_custom_call.1} parent=1 // pred_region
      %86 = dma.done [#allocation3], 32
    $region25: #{tpu_custom_call.1} parent=1 // pred_fallthru
      _
    %87 = vsyncpa [#allocation3], 1

</llo_original>
